<compile_context>
chip_gen: v7x
topology: tpu7x:2x2x1
jax: 0.10.0
libtpu: 0.0.40
codegen_flags: <defaults>
</compile_context>

<pallas_src>
import jax
import jax.numpy as jnp
from jax import lax
from jax.experimental import pallas as pl
from jax.experimental.pallas import tpu as pltpu


_VMEM_LIMIT_BYTES = 32 * 1024 * 1024        # explicit scoped-VMEM limit; safe on v5e/v6e/v7x
_DEFAULT_BLOCK_BUDGET = 20 * 1024 * 1024    # budget for the double-buffered value/out/gamma blocks
_PROJ_SINGLE_BLOCK_BUDGET = 8 * 1024 * 1024 # cutoff for the single-block projection kernel


# ---------------------------------------------------------------------------
# Kernel 1: fused gamma / beta projection (tiny; single whole-array block)
#   gamma_plus1 = query @ Wg^T + bg + 1
#   beta        = query @ Wb^T + bb
# ---------------------------------------------------------------------------
def _proj_kernel(q_ref, wg_ref, bg_ref, wb_ref, bb_ref, g1_ref, beta_ref):
    q = q_ref[...].astype(jnp.float32)                        # (Bq, Dq)
    dn = (((1,), (1,)), ((), ()))                             # contract on in-features dim
    g = lax.dot_general(q, wg_ref[...].astype(jnp.float32), dn,
                        preferred_element_type=jnp.float32)
    b = lax.dot_general(q, wb_ref[...].astype(jnp.float32), dn,
                        preferred_element_type=jnp.float32)
    g1_ref[...] = g + bg_ref[...].astype(jnp.float32) + 1.0   # fold the FiLM "+1" here
    beta_ref[...] = b + bb_ref[...].astype(jnp.float32)


# ---------------------------------------------------------------------------
# Kernel 2: streaming FiLM modulation   out = v * gamma_plus1 + beta
#   v / out block : (1, Db, Lb)
#   gamma / beta  : (1, Db, 1)   (constant along the lane axis of the block)
# ---------------------------------------------------------------------------
def _modulate_kernel(v_ref, g1_ref, b_ref, o_ref):
    v = v_ref[...].astype(jnp.float32)
    o_ref[...] = (v * g1_ref[...] + b_ref[...]).astype(o_ref.dtype)


def _sublane_unit(dtype):
    return {4: 8, 2: 16, 1: 32}.get(jnp.dtype(dtype).itemsize, 8)


def _pick_tiles(Dg, L, dtype, block_budget_bytes):
    """Pick (Db, Lb): 2x(in+out) blocks plus lane-padded gamma/beta fit the budget."""
    item = jnp.dtype(dtype).itemsize
    unit = _sublane_unit(dtype)
    # total VMEM ~= 2 * [2*Db*Lb*item + 2*Db*128*4]  =>  Db * (Lb*item + 512) <= budget/4
    budget = max(block_budget_bytes // 4, 1)

    max_lane = (budget // unit - 512) // item          # lane elems allowed at minimal Db
    if L <= max(max_lane, 0) or L <= 128:
        Lb = L                                         # full extent: fully contiguous rows
    else:
        Lb = max((max_lane // 128) * 128, 128)         # multiple of 128

    Db = (budget // (Lb * item + 512)) // unit * unit
    Db = max(Db, unit)
    if Db >= Dg:
        Db = Dg                                        # full extent is always legal
    return Db, Lb


# ---------------------------------------------------------------------------
# Wrapper: ADAPT forward
# ---------------------------------------------------------------------------
def adapt_forward(value, query, w_gamma, b_gamma, w_beta, b_beta, groups=1,
                  block_budget_bytes=_DEFAULT_BLOCK_BUDGET):
    """value: (B, D, T); query: (1, Dq) or (B, Dq); weights in PyTorch (out, in) layout."""
    B, D, T = value.shape
    Bq, Dq = query.shape
    assert D % groups == 0, "value_size must be divisible by groups"
    Dg = D // groups
    assert w_gamma.shape == (Dg, Dq) and w_beta.shape == (Dg, Dq)
    assert b_gamma.shape == (Dg,) and b_beta.shape == (Dg,)
    assert Bq in (1, B), "query batch must be 1 (one-to-many) or B (pairwise)"

    # ---- gamma_plus1 / beta projection --------------------------------------
    proj_bytes = 4 * (Bq * Dq + 2 * Dg * Dq + 2 * Dg + 2 * Bq * Dg)
    if 2 * proj_bytes <= _PROJ_SINGLE_BLOCK_BUDGET:
        gamma1, beta = pl.pallas_call(
            _proj_kernel,
            out_shape=(jax.ShapeDtypeStruct((Bq, Dg), jnp.float32),
                       jax.ShapeDtypeStruct((Bq, Dg), jnp.float32)),
        )(query, w_gamma, b_gamma.reshape(1, Dg), w_beta, b_beta.reshape(1, Dg))
    else:
        # Weights too big for one VMEM block (e.g. 4096x4096 f32 = 64 MiB): let XLA run
        # the two small gemms; contraction on the last dim avoids transposed copies.
        q32 = query.astype(jnp.float32)
        dn = (((1,), (1,)), ((), ()))
        gamma1 = lax.dot_general(q32, w_gamma.astype(jnp.float32), dn,
                                 preferred_element_type=jnp.float32) + b_gamma + 1.0
        beta = lax.dot_general(q32, w_beta.astype(jnp.float32), dn,
                               preferred_element_type=jnp.float32) + b_beta

    # ---- group-folded, lane-dense layout (free, contiguous reshape) ---------
    L = groups * T
    v2 = value.reshape(B, Dg, L)                       # (B, Dg, groups*T)
    gamma3 = gamma1[:, :, None]                        # (Bq, Dg, 1)   = gamma + 1
    beta3 = beta[:, :, None]                           # (Bq, Dg, 1)

    Db, Lb = _pick_tiles(Dg, L, value.dtype, block_budget_bytes)
    # L axis innermost: gamma/beta blocks are only re-DMAed when (b, i) changes and the
    # value DMA walks HBM contiguously (full-L rows are one contiguous span).
    grid = (B, pl.cdiv(Dg, Db), pl.cdiv(L, Lb))

    if Bq == B:                                        # pairwise adaptation
        qmap = lambda b, i, j: (b, i, 0)
    else:                                              # one-to-many broadcast (retrieval)
        qmap = lambda b, i, j: (0, i, 0)

    # TODO(synk): when L = groups*T < 128 the output blocks are lane-sparse (masked
    # stores); a fully lane-dense repack would need an in-kernel gamma/beta relayout.
    out2 = pl.pallas_call(
        _modulate_kernel,
        out_shape=jax.ShapeDtypeStruct((B, Dg, L), value.dtype),
        grid=grid,
        in_specs=[
            pl.BlockSpec((1, Db, Lb), lambda b, i, j: (b, i, j)),
            pl.BlockSpec((1, Db, 1), qmap),
            pl.BlockSpec((1, Db, 1), qmap),
        ],
        out_specs=pl.BlockSpec((1, Db, Lb), lambda b, i, j: (b, i, j)),
        compiler_params=pltpu.CompilerParams(
            dimension_semantics=("parallel", "parallel", "parallel"),
            vmem_limit_bytes=_VMEM_LIMIT_BYTES),
    )(v2, gamma3, beta3)

    return out2.reshape(B, D, T)


# ---------------------------------------------------------------------------
# Pure-JAX reference (mirrors the PyTorch forward exactly)
# ---------------------------------------------------------------------------
def adapt_reference(value, query, w_gamma, b_gamma, w_beta, b_beta, groups=1):
    B, D, T = value.shape
    Bq, _ = query.shape
    Dg = D // groups
    gammas = query @ w_gamma.T + b_gamma               # (Bq, Dg)
    betas = query @ w_beta.T + b_beta                  # (Bq, Dg)
    v = value.reshape(B, Dg, groups, T)
    out = v * (gammas.reshape(Bq, Dg, 1, 1) + 1.0) + betas.reshape(Bq, Dg, 1, 1)
    return out.reshape(B, D, T)


if __name__ == "__main__":
    base_key = jax.random.PRNGKey(0)

    def run_case(case_id, B, D, T, groups, query_batch,
                 block_budget_bytes=_DEFAULT_BLOCK_BUDGET):
        Dq = D                                          # query_size defaults to value_size
        Dg = D // groups
        ks = jax.random.split(jax.random.fold_in(base_key, case_id), 6)
        value = jax.random.normal(ks[0], (B, D, T), dtype=jnp.float32)
        query = jax.random.normal(ks[1], (query_batch, Dq), dtype=jnp.float32)
        # nn.Linear(query_size, value_size // groups) params, PyTorch (out, in) layout.
        w_gamma = jax.random.normal(ks[2], (Dg, Dq), dtype=jnp.float32) * 0.1
        b_gamma = jax.random.normal(ks[3], (Dg,), dtype=jnp.float32) * 0.1
        w_beta = jax.random.normal(ks[4], (Dg, Dq), dtype=jnp.float32) * 0.1
        b_beta = jax.random.normal(ks[5], (Dg,), dtype=jnp.float32) * 0.1

        out = jax.block_until_ready(adapt_forward(
            value, query, w_gamma, b_gamma, w_beta, b_beta, groups=groups,
            block_budget_bytes=block_budget_bytes))
        ref = adapt_reference(value, query, w_gamma, b_gamma, w_beta, b_beta, groups=groups)
        assert out.shape == (B, D, T)
        assert jnp.allclose(out, ref, atol=1e-4, rtol=1e-4), f"ADAPT mismatch (case {case_id})"

    # one-to-many (retrieval default) and pairwise adaptation; grouped and ungrouped
    run_case(0, B=2, D=32, T=16, groups=2, query_batch=1)
    run_case(1, B=2, D=32, T=16, groups=2, query_batch=2)
    run_case(2, B=2, D=32, T=16, groups=1, query_batch=1)
    # tiny block budget -> multi-block grid with partial edge blocks on both tiled axes
    run_case(3, B=2, D=88, T=72, groups=2, query_batch=2, block_budget_bytes=16 * 1024)

    print("KERNEL_OK")
</pallas_src>

<mosaic_0001>
module attributes {stable_mosaic.version = 11 : i64} {
  func.func @_proj_kernel(%arg0: memref<1x32xf32, #tpu.memory_space<vmem>>, %arg1: memref<16x32xf32, #tpu.memory_space<vmem>>, %arg2: memref<1x16xf32, #tpu.memory_space<vmem>>, %arg3: memref<16x32xf32, #tpu.memory_space<vmem>>, %arg4: memref<1x16xf32, #tpu.memory_space<vmem>>, %arg5: memref<1x16xf32, #tpu.memory_space<vmem>>, %arg6: memref<1x16xf32, #tpu.memory_space<vmem>>) attributes {dimension_semantics = [], scalar_prefetch = 0 : i64, scratch_operands = 0 : i64, tpu.core_type = #tpu.core_type<tc>} {
    %c0 = arith.constant 0 : index
    %c0_0 = arith.constant 0 : index
    %0 = vector.load %arg0[%c0, %c0_0] : memref<1x32xf32, #tpu.memory_space<vmem>>, vector<1x32xf32>
    %c0_1 = arith.constant 0 : index
    %c0_2 = arith.constant 0 : index
    %1 = vector.load %arg1[%c0_1, %c0_2] : memref<16x32xf32, #tpu.memory_space<vmem>>, vector<16x32xf32>
    %cst = arith.constant dense<0.000000e+00> : vector<1x16xf32>
    %2 = tpu.matmul %0, %1, %cst {dimension_numbers = #tpu.dot_dimension_numbers<[1], [1], [0], [0], [0, 0, 1, 0], [], []>} : vector<1x32xf32>, vector<16x32xf32>, vector<1x16xf32> -> vector<1x16xf32>
    %c0_3 = arith.constant 0 : index
    %c0_4 = arith.constant 0 : index
    %3 = vector.load %arg3[%c0_3, %c0_4] : memref<16x32xf32, #tpu.memory_space<vmem>>, vector<16x32xf32>
    %cst_5 = arith.constant dense<0.000000e+00> : vector<1x16xf32>
    %4 = tpu.matmul %0, %3, %cst_5 {dimension_numbers = #tpu.dot_dimension_numbers<[1], [1], [0], [0], [0, 0, 1, 0], [], []>} : vector<1x32xf32>, vector<16x32xf32>, vector<1x16xf32> -> vector<1x16xf32>
    %c0_6 = arith.constant 0 : index
    %c0_7 = arith.constant 0 : index
    %5 = vector.load %arg2[%c0_6, %c0_7] : memref<1x16xf32, #tpu.memory_space<vmem>>, vector<1x16xf32>
    %6 = arith.addf %2, %5 : vector<1x16xf32>
    %cst_8 = arith.constant 1.000000e+00 : f32
    %7 = vector.broadcast %cst_8 : f32 to vector<1x16xf32>
    %8 = arith.addf %6, %7 : vector<1x16xf32>
    %c0_9 = arith.constant 0 : index
    %c0_10 = arith.constant 0 : index
    %9 = vector.load %arg5[%c0_9, %c0_10] : memref<1x16xf32, #tpu.memory_space<vmem>>, vector<1x16xf32>
    tpu.vector_store %arg5[%c0_9, %c0_10], %8 {strides = array<i32>} : memref<1x16xf32, #tpu.memory_space<vmem>>, vector<1x16xf32>,
    %c0_11 = arith.constant 0 : index
    %c0_12 = arith.constant 0 : index
    %10 = vector.load %arg4[%c0_11, %c0_12] : memref<1x16xf32, #tpu.memory_space<vmem>>, vector<1x16xf32>
    %11 = arith.addf %4, %10 : vector<1x16xf32>
    %c0_13 = arith.constant 0 : index
    %c0_14 = arith.constant 0 : index
    %12 = vector.load %arg6[%c0_13, %c0_14] : memref<1x16xf32, #tpu.memory_space<vmem>>, vector<1x16xf32>
    tpu.vector_store %arg6[%c0_13, %c0_14], %11 {strides = array<i32>} : memref<1x16xf32, #tpu.memory_space<vmem>>, vector<1x16xf32>,
    return
  }
}

</mosaic_0001>

<llo_original>
// kernel: tpu_custom_call.1
$region0: #{tpu_custom_call.1}
  #allocation0 [shape = 'u32[]', space=smem, size = 0x4, offset = 0x4, fixed_abs, tag = 'smem constant byte address 0x4 - core index']
  #allocation1 [shape = 'u32[144,128]{1,0:T(1,128)}', space=vmem, size = 0x12000, scoped, tag = 'internal scratch']
  %s0 = inlined_call_operand.hbm [shape: f32[1,32], index: 0, kind: input, shape index: {}]
  %s1 = inlined_call_operand.hbm [shape: f32[16,32], index: 1, kind: input, shape index: {}]
  %s2 = inlined_call_operand.vmem [shape: f32[1,16], index: 2, kind: input, shape index: {}]
  %s3 = inlined_call_operand.hbm [shape: f32[16,32], index: 3, kind: input, shape index: {}]
  %s4 = inlined_call_operand.vmem [shape: f32[1,16], index: 4, kind: input, shape index: {}]
  %s5 = inlined_call_operand.hbm [shape: f32[1,16], index: 5, kind: output, shape index: {0}]
  %s6 = inlined_call_operand.hbm [shape: f32[1,16], index: 6, kind: output, shape index: {1}]
  %7 = xla_tuple %s5, %s6
  %s8 = sld [smem:[#allocation0]]
  $region50: #{tpu_custom_call.1} parent=0
    _
  %s10 = ssub.s32 1, %s8
  %s11 = scalar_select 0, %s10, %s8
  $region1: #{tpu_custom_call.1} parent=0
    #allocation2 [shape = 'u8[512]{0}', space=vmem, size = 0x400, scoped, tag = 'input window, operand 0, single buffered']
    #allocation3 [shape = 's32[1]{0}', space=sflag, size = 0x4, scoped, tag = 'scoped memory for tpu_custom_call.1']
    #allocation4 [shape = 's32[1]{0}', space=sflag, size = 0x4, scoped, tag = 'scoped memory for tpu_custom_call.1']
    #allocation5 [shape = 'u8[8192]{0}', space=vmem, size = 0x2000, scoped, tag = 'input window, operand 1, single buffered']
    #allocation6 [shape = 's32[1]{0}', space=sflag, size = 0x4, scoped, tag = 'scoped memory for tpu_custom_call.1']
    #allocation7 [shape = 'u8[8192]{0}', space=vmem, size = 0x2000, scoped, tag = 'input window, operand 3, single buffered']
    #allocation8 [shape = 'u8[512]{0}', space=vmem, size = 0x400, scoped, tag = 'output window, operand 0, single buffered']
    #allocation9 [shape = 'u8[512]{0}', space=vmem, size = 0x400, scoped, tag = 'output window, operand 1, single buffered']
    #allocation10 [shape = 's32[1]{0}', space=sflag, size = 0x4, scoped, tag = 'scoped memory for tpu_custom_call.1']
    %12 = vsyncpa [#allocation3], 0
    %13 = vsyncpa [#allocation6], 0
    %14 = vsyncpa [#allocation4], 0
    %15 = vsyncpa [#allocation10], 0
    // Predicated region
    $region2: #{tpu_custom_call.1} parent=1 // pred_check
      _
    $region3: #{tpu_custom_call.1} parent=1 // pred_check_branch
      %17 = sbr.rel (0) target = $region5
    $region4: #{tpu_custom_call.1} parent=1 // pred_region
      %s19 = ssub.s32 16, 16
      %20 = vsyncadd [#allocation3], %s19
      %s22 = sshll.u32 [#allocation2], 4
      %s23 = int_to_ptr.vmem [resolvable:$true] %s22
      %25 = dma.hbm_to_vmem [thread:$0]  %s0, 16, %s23, [#allocation3]
    $region5: #{tpu_custom_call.1} parent=1 // pred_fallthru
      _
    // Predicated region
    $region6: #{tpu_custom_call.1} parent=1 // pred_check
      _
    $region7: #{tpu_custom_call.1} parent=1 // pred_check_branch
      %27 = sbr.rel (0) target = $region9
    $region8: #{tpu_custom_call.1} parent=1 // pred_region
      %s29 = ssub.s32 256, 256
      %30 = vsyncadd [#allocation6], %s29
      %s31 = sshll.u32 [#allocation5], 4
      %s32 = int_to_ptr.vmem [resolvable:$true] %s31
      %37 = dma.hbm_to_vmem [thread:$0]  %s1, 256, %s32, [#allocation6], 128, 128, 8
    $region9: #{tpu_custom_call.1} parent=1 // pred_fallthru
      _
    // Predicated region
    $region10: #{tpu_custom_call.1} parent=1 // pred_check
      _
    $region11: #{tpu_custom_call.1} parent=1 // pred_check_branch
      %39 = sbr.rel (0) target = $region13
    $region12: #{tpu_custom_call.1} parent=1 // pred_region
      _
    $region13: #{tpu_custom_call.1} parent=1 // pred_fallthru
      _
    // Predicated region
    $region14: #{tpu_custom_call.1} parent=1 // pred_check
      _
    $region15: #{tpu_custom_call.1} parent=1 // pred_check_branch
      %41 = sbr.rel (0) target = $region17
    $region16: #{tpu_custom_call.1} parent=1 // pred_region
      %s43 = ssub.s32 256, 256
      %44 = vsyncadd [#allocation6], %s43
      %s45 = sshll.u32 [#allocation7], 4
      %s46 = int_to_ptr.vmem [resolvable:$true] %s45
      %51 = dma.hbm_to_vmem [thread:$0]  %s3, 256, %s46, [#allocation6], 128, 128, 8
    $region17: #{tpu_custom_call.1} parent=1 // pred_fallthru
      _
    // Predicated region
    $region18: #{tpu_custom_call.1} parent=1 // pred_check
      _
    $region19: #{tpu_custom_call.1} parent=1 // pred_check_branch
      %53 = sbr.rel (0) target = $region21
    $region20: #{tpu_custom_call.1} parent=1 // pred_region
      _
    $region21: #{tpu_custom_call.1} parent=1 // pred_fallthru
      _
    // Predicated region
    $region22: #{tpu_custom_call.1} parent=1 // pred_check
      _
    $region23: #{tpu_custom_call.1} parent=1 // pred_check_branch
      %55 = sbr.rel (0) target = $region25
    $region24: #{tpu_custom_call.1} parent=1 // pred_region
      %56 = dma.done [#allocation3], 16
    $region25: #{tpu_custom_call.1} parent=1 // pred_fallthru
      _
    // Predicated region
    $region26: #{tpu_custom_call.1} parent=1 // pred_check
      _
    $region27: #{tpu_custom_call.1} parent=1 // pred_check_branch
      %58 = sbr.rel (0) target = $region29
    $region28: #{tpu_custom_call.1} parent=1 // pred_region
      %59 = dma.done [#allocation6], 256
    $region29: #{tpu_custom_call.1} parent=1 // pred_fallthru
      _
    // Predicated region
    $region30: #{tpu_custom_call.1} parent=1 // pred_check
      _
    $region31: #{tpu_custom_call.1} parent=1 // pred_check_branch
      %61 = sbr.rel (0) target = $region33
    $region32: #{tpu_custom_call.1} parent=1 // pred_region
      %62 = dma.done [#allocation6], 256
    $region33: #{tpu_custom_call.1} parent=1 // pred_fallthru
      _
    %v63 = vld [vmem:[#allocation2] sm:$0x1]
    %v64 = vld [vmem:[#allocation5] sm:$0xff]
    %v65 = vld [vmem:[#allocation5 + $0x8] sm:$0xff]
    %v66 = vld [vmem:[#allocation7] sm:$0xff]
    %v67 = vld [vmem:[#allocation7 + $0x8] sm:$0xff]
    %v68 = vld [vmem:[%s2] sm:$0x1]
    %vm69 = vcmask 261120
    %v71 = vsel %vm69, %v63, 0
    %v74 = vsel %vm69, %v64, 0
    %v77 = vsel %vm69, %v65, 0
    %79 = vmatprep.subr.mxu0 0.0
    %80 = vmatpush1.xpose.msra.mxu0 %v74
    %81 = vmatprep.subr.mxu0 0.0
    %82 = vmatpush1.xpose.msra.mxu0 %v77
    %83 = vmatprep.subr.mxu0 0.0
    %84 = vmatpush1.xpose.msra.mxu0 0.0
    %85 = vmatprep.subr.mxu0 0.0
    %86 = vmatpush1.xpose.msra.mxu0 0.0
    %87 = vmatprep.subr.mxu0 0.0
    %88 = vmatpush1.xpose.msra.mxu0 0.0
    %89 = vmatprep.subr.mxu0 0.0
    %90 = vmatpush1.xpose.msra.mxu0 0.0
    %91 = vmatprep.subr.mxu0 0.0
    %92 = vmatpush1.xpose.msra.mxu0 0.0
    %93 = vmatprep.subr.mxu0 0.0
    %94 = vmatpush1.xpose.msra.mxu0 0.0
    %95 = vmatprep.subr.mxu0 0.0
    %96 = vmatpush1.xpose.msra.mxu0 0.0
    %97 = vmatprep.subr.mxu0 0.0
    %98 = vmatpush1.xpose.msra.mxu0 0.0
    %99 = vmatprep.subr.mxu0 0.0
    %100 = vmatpush1.xpose.msra.mxu0 0.0
    %101 = vmatprep.subr.mxu0 0.0
    %102 = vmatpush1.xpose.msra.mxu0 0.0
    %103 = vmatprep.subr.mxu0 0.0
    %104 = vmatpush1.xpose.msra.mxu0 0.0
    %105 = vmatprep.subr.mxu0 0.0
    %106 = vmatpush1.xpose.msra.mxu0 0.0
    %107 = vmatprep.subr.mxu0 0.0
    %108 = vmatpush1.xpose.msra.mxu0 0.0
    %109 = vmatprep.subr.mxu0 0.0
    %110 = vmatpush1.xpose.msra.mxu0 0.0
    %111 = vmatprep.subr.mxu0 0.0
    %112 = vmatpush1.xpose.msra.mxu0 0.0
    %113 = vmatprep.subr.mxu0 0.0
    %114 = vmatpush1.xpose.msra.mxu0 0.0
    %115 = vmatprep.subr.mxu0 0.0
    %116 = vmatpush1.xpose.msra.mxu0 0.0
    %117 = vmatprep.subr.mxu0 0.0
    %118 = vmatpush1.xpose.msra.mxu0 0.0
    %119 = vmatprep.subr.mxu0 0.0
    %120 = vmatpush1.xpose.msra.mxu0 0.0
    %121 = vmatprep.subr.mxu0 0.0
    %122 = vmatpush1.xpose.msra.mxu0 0.0
    %123 = vmatprep.subr.mxu0 0.0
    %124 = vmatpush1.xpose.msra.mxu0 0.0
    %125 = vmatprep.subr.mxu0 0.0
    %126 = vmatpush1.xpose.msra.mxu0 0.0
    %127 = vmatprep.subr.mxu0 0.0
    %128 = vmatpush1.xpose.msra.mxu0 0.0
    %129 = vmatprep.subr.mxu0 0.0
    %130 = vmatpush1.xpose.msra.mxu0 0.0
    %131 = vmatprep.subr.mxu0 0.0
    %132 = vmatpush1.xpose.msra.mxu0 0.0
    %133 = vmatprep.subr.mxu0 0.0
    %134 = vmatpush1.xpose.msra.mxu0 0.0
    %135 = vmatprep.subr.mxu0 0.0
    %136 = vmatpush1.xpose.msra.mxu0 0.0
    %137 = vmatprep.subr.mxu0 0.0
    %138 = vmatpush1.xpose.msra.mxu0 0.0
    %139 = vmatprep.subr.mxu0 0.0
    %140 = vmatpush1.xpose.msra.mxu0 0.0
    %141 = vmatprep.subr.mxu0 0.0
    %142 = vmatpush1.xpose.msra.mxu0 0.0
    %143 = vmatprep.mubr.f32.mxu0 0.0
    %144 = vmatmul.mubr.f32.gmra.mrb[0].mxu0 %v71
    %v145 = vpop.f32.mrb[0].mxu0
    %v146 = vadd.f32 %v68, %v145
    %v147 = vpop.f32.mrb[0].mxu0
    %148 = vdwg.mxu0
    %v149 = vadd.f32 %v146, 1.0
    %vm150 = vcmask 122880
    %151 = vst.msk [vmem:[#allocation8] sm:$0x1] %vm150, %v149
    %v152 = vld [vmem:[%s4] sm:$0x1]
    %v154 = vsel %vm69, %v66, 0
    %v157 = vsel %vm69, %v67, 0
    %159 = vmatprep.subr.mxu0 0.0
    %160 = vmatpush1.xpose.msra.mxu0 %v154
    %161 = vmatprep.subr.mxu0 0.0
    %162 = vmatpush1.xpose.msra.mxu0 %v157
    %163 = vmatprep.subr.mxu0 0.0
    %164 = vmatpush1.xpose.msra.mxu0 0.0
    %165 = vmatprep.subr.mxu0 0.0
    %166 = vmatpush1.xpose.msra.mxu0 0.0
    %167 = vmatprep.subr.mxu0 0.0
    %168 = vmatpush1.xpose.msra.mxu0 0.0
    %169 = vmatprep.subr.mxu0 0.0
    %170 = vmatpush1.xpose.msra.mxu0 0.0
    %171 = vmatprep.subr.mxu0 0.0
    %172 = vmatpush1.xpose.msra.mxu0 0.0
    %173 = vmatprep.subr.mxu0 0.0
    %174 = vmatpush1.xpose.msra.mxu0 0.0
    %175 = vmatprep.subr.mxu0 0.0
    %176 = vmatpush1.xpose.msra.mxu0 0.0
    %177 = vmatprep.subr.mxu0 0.0
    %178 = vmatpush1.xpose.msra.mxu0 0.0
    %179 = vmatprep.subr.mxu0 0.0
    %180 = vmatpush1.xpose.msra.mxu0 0.0
    %181 = vmatprep.subr.mxu0 0.0
    %182 = vmatpush1.xpose.msra.mxu0 0.0
    %183 = vmatprep.subr.mxu0 0.0
    %184 = vmatpush1.xpose.msra.mxu0 0.0
    %185 = vmatprep.subr.mxu0 0.0
    %186 = vmatpush1.xpose.msra.mxu0 0.0
    %187 = vmatprep.subr.mxu0 0.0
    %188 = vmatpush1.xpose.msra.mxu0 0.0
    %189 = vmatprep.subr.mxu0 0.0
    %190 = vmatpush1.xpose.msra.mxu0 0.0
    %191 = vmatprep.subr.mxu0 0.0
    %192 = vmatpush1.xpose.msra.mxu0 0.0
    %193 = vmatprep.subr.mxu0 0.0
    %194 = vmatpush1.xpose.msra.mxu0 0.0
    %195 = vmatprep.subr.mxu0 0.0
    %196 = vmatpush1.xpose.msra.mxu0 0.0
    %197 = vmatprep.subr.mxu0 0.0
    %198 = vmatpush1.xpose.msra.mxu0 0.0
    %199 = vmatprep.subr.mxu0 0.0
    %200 = vmatpush1.xpose.msra.mxu0 0.0
    %201 = vmatprep.subr.mxu0 0.0
    %202 = vmatpush1.xpose.msra.mxu0 0.0
    %203 = vmatprep.subr.mxu0 0.0
    %204 = vmatpush1.xpose.msra.mxu0 0.0
    %205 = vmatprep.subr.mxu0 0.0
    %206 = vmatpush1.xpose.msra.mxu0 0.0
    %207 = vmatprep.subr.mxu0 0.0
    %208 = vmatpush1.xpose.msra.mxu0 0.0
    %209 = vmatprep.subr.mxu0 0.0
    %210 = vmatpush1.xpose.msra.mxu0 0.0
    %211 = vmatprep.subr.mxu0 0.0
    %212 = vmatpush1.xpose.msra.mxu0 0.0
    %213 = vmatprep.subr.mxu0 0.0
    %214 = vmatpush1.xpose.msra.mxu0 0.0
    %215 = vmatprep.subr.mxu0 0.0
    %216 = vmatpush1.xpose.msra.mxu0 0.0
    %217 = vmatprep.subr.mxu0 0.0
    %218 = vmatpush1.xpose.msra.mxu0 0.0
    %219 = vmatprep.subr.mxu0 0.0
    %220 = vmatpush1.xpose.msra.mxu0 0.0
    %221 = vmatprep.subr.mxu0 0.0
    %222 = vmatpush1.xpose.msra.mxu0 0.0
    %223 = vmatprep.mubr.f32.mxu0 0.0
    %224 = vmatmul.mubr.f32.gmra.mrb[0].mxu0 %v71
    %v225 = vpop.f32.mrb[0].mxu0
    %v226 = vadd.f32 %v152, %v225
    %v227 = vpop.f32.mrb[0].mxu0
    %228 = vdwg.mxu0
    %229 = vst.msk [vmem:[#allocation9] sm:$0x1] %vm150, %v226
    // Predicated region
    $region34: #{tpu_custom_call.1} parent=1 // pred_check
      _
    $region35: #{tpu_custom_call.1} parent=1 // pred_check_branch
      %231 = sbr.rel (0) target = $region37
    $region36: #{tpu_custom_call.1} parent=1 // pred_region
      %s233 = ssub.s32 16, 16
      %234 = vsyncadd [#allocation4], %s233
      %s236 = sshll.u32 [#allocation8], 4
      %s237 = int_to_ptr.vmem [resolvable:$true] %s236
      %239 = dma.vmem_to_hbm [thread:$0]  %s237, 16, %s5, [#allocation4]
    $region37: #{tpu_custom_call.1} parent=1 // pred_fallthru
      _
    // Predicated region
    $region38: #{tpu_custom_call.1} parent=1 // pred_check
      _
    $region39: #{tpu_custom_call.1} parent=1 // pred_check_branch
      %241 = sbr.rel (0) target = $region41
    $region40: #{tpu_custom_call.1} parent=1 // pred_region
      %s243 = ssub.s32 16, 16
      %244 = vsyncadd [#allocation10], %s243
      %s246 = sshll.u32 [#allocation9], 4
      %s247 = int_to_ptr.vmem [resolvable:$true] %s246
      %249 = dma.vmem_to_hbm [thread:$0]  %s247, 16, %s6, [#allocation10]
    $region41: #{tpu_custom_call.1} parent=1 // pred_fallthru
      _
    // Predicated region
    $region42: #{tpu_custom_call.1} parent=1 // pred_check
      _
    $region43: #{tpu_custom_call.1} parent=1 // pred_check_branch
      %251 = sbr.rel (0) target = $region45
    $region44: #{tpu_custom_call.1} parent=1 // pred_region
      %252 = dma.done [#allocation4], 16
    $region45: #{tpu_custom_call.1} parent=1 // pred_fallthru
      _
    // Predicated region
    $region46: #{tpu_custom_call.1} parent=1 // pred_check
      _
    $region47: #{tpu_custom_call.1} parent=1 // pred_check_branch
      %254 = sbr.rel (0) target = $region49
    $region48: #{tpu_custom_call.1} parent=1 // pred_region
      %255 = dma.done [#allocation10], 16
    $region49: #{tpu_custom_call.1} parent=1 // pred_fallthru
      _
    %256 = vsyncpa [#allocation3], 1
    %257 = vsyncpa [#allocation6], 1
    %258 = vsyncpa [#allocation4], 1
    %259 = vsyncpa [#allocation10], 1

</llo_original>
